<compile_context>
chip_gen: v7x
topology: tpu7x:2x2x1
jax: 0.10.0
libtpu: 0.0.40
codegen_flags: <defaults>
</compile_context>

<pallas_src>
import functools

import jax
import jax.numpy as jnp
from jax import lax
from jax.experimental import pallas as pl
from jax.experimental.pallas import tpu as pltpu


_MXU_DTYPE = jnp.bfloat16            # native MXU input dtype on v5e/v6e/v7x
_VMEM_BUDGET_BYTES = 12 * 1024 * 1024


def _basic_conv_kernel(p_ref, w_ref, o_ref):
    """One M-tile of relu(patches @ weight) — no in-kernel reshapes/relayouts.

    p_ref: (tile_m, K)        bf16 im2col patch tile for this grid step
    w_ref: (K, Cout_pad)      bf16 weight, zero-padded to 128 lanes, resident
    o_ref: (tile_m, Cout_pad) f32 lane-dense output tile
    """
    acc = jnp.dot(p_ref[...], w_ref[...], preferred_element_type=jnp.float32)
    o_ref[...] = jnp.maximum(acc, 0.0).astype(o_ref.dtype)


def _tensorcores_per_chip():
    """Best-effort chip gating: 2 on v7x-like parts (<=64 MiB VMEM/TC), else 1."""
    try:
        info = pltpu.get_tpu_info()
        vmem = int(getattr(info, "vmem_capacity_bytes", 128 * 1024 * 1024))
        if vmem <= 64 * 1024 * 1024:
            return 2
    except Exception:
        pass
    return 1


def basic_conv_forward(x_nchw, weight_oihw, *, stride=1, padding=1,
                       dilation=1, groups=1):
    """relu(conv2d(x, w, stride=1, padding=padding, bias=None)) via Pallas.

    x_nchw:      (N, Cin, H, W)      float32
    weight_oihw: (Cout, Cin, KH, KW) float32 (PyTorch Conv2d weight layout)
    returns:     (N, Cout, H_out, W_out) float32
    """
    # Only the default BasicConv config is supported; fail loudly otherwise.
    assert stride == 1 and dilation == 1 and groups == 1, (
        "Pallas BasicConv kernel supports stride=1, dilation=1, groups=1 only")
    # TODO(synk): bn / up_size (bilinear upsample) / fan (ConvTranspose2d) /
    # bias branches of BasicConv are not implemented (module defaults are off).

    N, Cin, H, W = x_nchw.shape
    Cout, Cin_w, KH, KW = weight_oihw.shape
    assert Cin == Cin_w

    Ho = H + 2 * padding - KH + 1
    Wo = W + 2 * padding - KW + 1
    K = KH * KW * Cin
    cout_pad = max(128, pl.cdiv(Cout, 128) * 128)   # lane-dense output width

    # ---- glue (fused by XLA under jit): layout + zero-pad + im2col ----------
    # In a full ESRT chain keep activations NHWC end-to-end so these two
    # transposes disappear; they are kept here only to match the NCHW module.
    x_nhwc = jnp.transpose(x_nchw, (0, 2, 3, 1))
    x_pad = jnp.pad(x_nhwc, ((0, 0), (padding, padding),
                             (padding, padding), (0, 0)))
    taps = [x_pad[:, kh:kh + Ho, kw:kw + Wo, :]
            for kh in range(KH) for kw in range(KW)]
    # (N, Ho, Wo, KH*KW*Cin) -> (M, K); tap order is (kh, kw, ci).
    patches = jnp.concatenate(taps, axis=-1).reshape(N * Ho * Wo, K)
    patches = patches.astype(_MXU_DTYPE)

    # Weight (Cout, Cin, KH, KW) -> (KH, KW, Cin, Cout) -> (K, Cout); flat K
    # order (kh, kw, ci) matches the patch concatenation above.  Zero-pad the
    # lane (Cout) dim to 128 so the MXU result is already lane-dense — the
    # padding is free on the MXU (128/256-wide passes either way).
    w_mat = jnp.transpose(weight_oihw, (2, 3, 1, 0)).reshape(K, Cout)
    w_mat = jnp.pad(w_mat, ((0, 0), (0, cout_pad - Cout))).astype(_MXU_DTYPE)

    # ---- M-tile selection: VMEM byte budget + chip gating -------------------
    m_total = N * Ho * Wo
    in_bytes = jnp.dtype(_MXU_DTYPE).itemsize
    out_bytes = jnp.dtype(x_nchw.dtype).itemsize
    per_row = 2 * K * in_bytes + 2 * cout_pad * out_bytes   # double-buffered
    rows_budget = max(8, (_VMEM_BUDGET_BYTES // per_row) // 8 * 8)
    num_tiles = max(_tensorcores_per_chip(), pl.cdiv(m_total, rows_budget))
    tile_m = pl.cdiv(pl.cdiv(m_total, num_tiles), 8) * 8
    m_pad = tile_m * num_tiles
    if m_pad != m_total:
        # Zero rows pass harmlessly through conv+relu and are sliced off below.
        patches = jnp.pad(patches, ((0, m_pad - m_total), (0, 0)))

    out_slab = pl.pallas_call(
        _basic_conv_kernel,
        out_shape=jax.ShapeDtypeStruct((m_pad, cout_pad), x_nchw.dtype),
        grid_spec=pltpu.PrefetchScalarGridSpec(
            num_scalar_prefetch=0,
            grid=(num_tiles,),
            in_specs=[
                # im2col patch slab: one M-tile per grid step.
                pl.BlockSpec((tile_m, K), lambda i: (i, 0)),
                # Full (tiny) weight, constant index -> stays resident.
                pl.BlockSpec((K, cout_pad), lambda i: (0, 0)),
            ],
            out_specs=pl.BlockSpec((tile_m, cout_pad), lambda i: (i, 0)),
        ),
        compiler_params=pltpu.CompilerParams(
            dimension_semantics=("parallel",)),
    )(patches, w_mat)

    # Lane-dense padded slab -> (N, Ho, Wo, Cout) -> NCHW.
    out_nhwc = out_slab[:m_total, :Cout].reshape(N, Ho, Wo, Cout)
    return jnp.transpose(out_nhwc, (0, 3, 1, 2))


def _reference(x_nchw, weight_oihw, padding=1):
    y = lax.conv_general_dilated(
        x_nchw, weight_oihw,
        window_strides=(1, 1),
        padding=((padding, padding), (padding, padding)),
        dimension_numbers=("NCHW", "OIHW", "NCHW"),
        precision=lax.Precision.HIGHEST,
    )
    return jnp.maximum(y, 0.0)


if __name__ == "__main__":
    # Module config: BasicConv(in_planes=4, out_planes=8, kernel_size=3)
    in_planes, out_planes, ksize, padding = 4, 8, 3, 1
    N, H, W = 2, 16, 16

    key = jax.random.PRNGKey(0)
    kx, kw = jax.random.split(key)
    x = jax.random.normal(kx, (N, in_planes, H, W), dtype=jnp.float32)
    # Deterministic Conv2d-style weight, (Cout, Cin, KH, KW), bias=False.
    weight = jax.random.normal(
        kw, (out_planes, in_planes, ksize, ksize), dtype=jnp.float32) * 0.1

    conv = jax.jit(functools.partial(basic_conv_forward, padding=padding))
    y = jax.block_until_ready(conv(x, weight))

    y_ref = _reference(x, weight, padding=padding)
    assert y.shape == (N, out_planes, H, W)
    # bf16 MXU operands (per perf review) with f32 accumulation: tolerance
    # relaxed from 1e-3 to 1e-2 accordingly.
    max_err = jnp.max(jnp.abs(y - y_ref))
    assert jnp.allclose(y, y_ref, atol=1e-2, rtol=1e-2), (
        f"mismatch vs reference, max abs err = {max_err}")

    print("KERNEL_OK")
</pallas_src>

<mosaic_0001>
module attributes {stable_mosaic.version = 11 : i64} {
  func.func @_basic_conv_kernel(%arg0: i32, %arg1: memref<512x36xbf16, #tpu.memory_space<vmem>>, %arg2: memref<36x128xbf16, #tpu.memory_space<vmem>>, %arg3: memref<512x128xf32, #tpu.memory_space<vmem>>) attributes {dimension_semantics = [#tpu.dimension_semantics<parallel>], iteration_bounds = array<i64: 1>, scalar_prefetch = 0 : i64, scratch_operands = 0 : i64, tpu.core_type = #tpu.core_type<tc>, window_params = [{transform_indices = @transform_0, window_bounds = array<i64: 512, 36>}, {pipeline_mode = #tpu.pipeline_mode<synchronous>, transform_indices = @transform_1, window_bounds = array<i64: 36, 128>}, {transform_indices = @transform_2, window_bounds = array<i64: 512, 128>}]} {
    %c0 = arith.constant 0 : index
    %c0_0 = arith.constant 0 : index
    %0 = vector.load %arg1[%c0, %c0_0] : memref<512x36xbf16, #tpu.memory_space<vmem>>, vector<512x36xbf16>
    %c0_1 = arith.constant 0 : index
    %c0_2 = arith.constant 0 : index
    %1 = vector.load %arg2[%c0_1, %c0_2] : memref<36x128xbf16, #tpu.memory_space<vmem>>, vector<36x128xbf16>
    %cst = arith.constant dense<0.000000e+00> : vector<512x128xf32>
    %2 = tpu.matmul %0, %1, %cst {dimension_numbers = #tpu.dot_dimension_numbers<[1], [0], [0], [1], [0, 0, 1, 1], [], []>} : vector<512x36xbf16>, vector<36x128xbf16>, vector<512x128xf32> -> vector<512x128xf32>
    %cst_3 = arith.constant 0.000000e+00 : f32
    %3 = vector.broadcast %cst_3 : f32 to vector<512x128xf32>
    %4 = arith.maximumf %2, %3 : vector<512x128xf32>
    %c0_4 = arith.constant 0 : index
    %c0_5 = arith.constant 0 : index
    %5 = vector.load %arg3[%c0_4, %c0_5] : memref<512x128xf32, #tpu.memory_space<vmem>>, vector<512x128xf32>
    tpu.vector_store %arg3[%c0_4, %c0_5], %4 {strides = array<i32>} : memref<512x128xf32, #tpu.memory_space<vmem>>, vector<512x128xf32>,
    return
  }
  func.func @transform_0(%arg0: i32) -> (i32, i32) {
    %c0_i32 = arith.constant 0 : i32
    %c0_i32_0 = arith.constant 0 : i32
    return %arg0, %c0_i32 : i32, i32
  }
  func.func @transform_1(%arg0: i32) -> (i32, i32) {
    %c0_i32 = arith.constant 0 : i32
    %c0_i32_0 = arith.constant 0 : i32
    %c0_i32_1 = arith.constant 0 : i32
    return %c0_i32, %c0_i32_0 : i32, i32
  }
  func.func @transform_2(%arg0: i32) -> (i32, i32) {
    %c0_i32 = arith.constant 0 : i32
    %c0_i32_0 = arith.constant 0 : i32
    return %arg0, %c0_i32 : i32, i32
  }
}

</mosaic_0001>

<llo_original>
// kernel: basic_conv_forward.1
$region0: #{basic_conv_forward.1}
  #allocation0 [shape = 'u32[]', space=smem, size = 0x4, offset = 0x4, fixed_abs, tag = 'smem constant byte address 0x4 - core index']
  #allocation1 [shape = 'u32[144,128]{1,0:T(1,128)}', space=vmem, size = 0x12000, scoped, tag = 'internal scratch']
  %s0 = inlined_call_operand.vmem [shape: bf16[512,36], index: 0, kind: input, shape index: {}]
  %s1 = inlined_call_operand.vmem [shape: bf16[36,128], index: 1, kind: input, shape index: {}]
  %s2 = inlined_call_operand.vmem [shape: f32[512,128], index: 2, kind: output, shape index: {}]
  %s3 = sld [smem:[#allocation0]]
  $region18: #{basic_conv_forward.1} parent=0
    _
  %s5 = ssub.s32 1, %s3
  %s6 = scalar_select 0, %s5, %s3
  // Predicated region
  $region2: #{basic_conv_forward.1} parent=0 // pred_check
    _
  $region3: #{basic_conv_forward.1} parent=0 // pred_check_branch
    %8 = sbr.rel (0) target = $region5
  $region4: #{basic_conv_forward.1} parent=0 // pred_region
    _
  $region5: #{basic_conv_forward.1} parent=0 // pred_fallthru
    _
  // Predicated region
  $region6: #{basic_conv_forward.1} parent=0 // pred_check
    _
  $region7: #{basic_conv_forward.1} parent=0 // pred_check_branch
    %10 = sbr.rel (0) target = $region9
  $region8: #{basic_conv_forward.1} parent=0 // pred_region
    _
  $region9: #{basic_conv_forward.1} parent=0 // pred_fallthru
    _
  %v12 = vld [vmem:[%s0] sm:$0xf]
  %v13 = vld [vmem:[%s0 + $0x4] sm:$0xf]
  %v14 = vld [vmem:[%s0 + $0x8] sm:$0xf]
  %v15 = vld [vmem:[%s0 + $0xc] sm:$0xf]
  %v16 = vld [vmem:[%s0 + $0x10] sm:$0xf]
  %v17 = vld [vmem:[%s0 + $0x14] sm:$0xf]
  %v18 = vld [vmem:[%s0 + $0x18] sm:$0xf]
  %v19 = vld [vmem:[%s0 + $0x1c] sm:$0xf]
  %v20 = vld [vmem:[%s0 + $0x20] sm:$0xf]
  %v21 = vld [vmem:[%s0 + $0x24] sm:$0xf]
  %v22 = vld [vmem:[%s0 + $0x28] sm:$0xf]
  %v23 = vld [vmem:[%s0 + $0x2c] sm:$0xf]
  %v24 = vld [vmem:[%s0 + $0x30] sm:$0xf]
  %v25 = vld [vmem:[%s0 + $0x34] sm:$0xf]
  %v26 = vld [vmem:[%s0 + $0x38] sm:$0xf]
  %v27 = vld [vmem:[%s0 + $0x3c] sm:$0xf]
  %v28 = vld [vmem:[%s0 + $0x40] sm:$0xf]
  %v29 = vld [vmem:[%s0 + $0x44] sm:$0xf]
  %v30 = vld [vmem:[%s0 + $0x48] sm:$0xf]
  %v31 = vld [vmem:[%s0 + $0x4c] sm:$0xf]
  %v32 = vld [vmem:[%s0 + $0x50] sm:$0xf]
  %v33 = vld [vmem:[%s0 + $0x54] sm:$0xf]
  %v34 = vld [vmem:[%s0 + $0x58] sm:$0xf]
  %v35 = vld [vmem:[%s0 + $0x5c] sm:$0xf]
  %v36 = vld [vmem:[%s0 + $0x60] sm:$0xf]
  %v37 = vld [vmem:[%s0 + $0x64] sm:$0xf]
  %v38 = vld [vmem:[%s0 + $0x68] sm:$0xf]
  %v39 = vld [vmem:[%s0 + $0x6c] sm:$0xf]
  %v40 = vld [vmem:[%s0 + $0x70] sm:$0xf]
  %v41 = vld [vmem:[%s0 + $0x74] sm:$0xf]
  %v42 = vld [vmem:[%s0 + $0x78] sm:$0xf]
  %v43 = vld [vmem:[%s0 + $0x7c] sm:$0xf]
  %v44 = vld [vmem:[%s0 + $0x80] sm:$0xf]
  %v45 = vld [vmem:[%s0 + $0x84] sm:$0xf]
  %v46 = vld [vmem:[%s0 + $0x88] sm:$0xf]
  %v47 = vld [vmem:[%s0 + $0x8c] sm:$0xf]
  %v48 = vld [vmem:[%s0 + $0x90] sm:$0xf]
  %v49 = vld [vmem:[%s0 + $0x94] sm:$0xf]
  %v50 = vld [vmem:[%s0 + $0x98] sm:$0xf]
  %v51 = vld [vmem:[%s0 + $0x9c] sm:$0xf]
  %v52 = vld [vmem:[%s0 + $0xa0] sm:$0xf]
  %v53 = vld [vmem:[%s0 + $0xa4] sm:$0xf]
  %v54 = vld [vmem:[%s0 + $0xa8] sm:$0xf]
  %v55 = vld [vmem:[%s0 + $0xac] sm:$0xf]
  %v56 = vld [vmem:[%s0 + $0xb0] sm:$0xf]
  %v57 = vld [vmem:[%s0 + $0xb4] sm:$0xf]
  %v58 = vld [vmem:[%s0 + $0xb8] sm:$0xf]
  %v59 = vld [vmem:[%s0 + $0xbc] sm:$0xf]
  %v60 = vld [vmem:[%s0 + $0xc0] sm:$0xf]
  %v61 = vld [vmem:[%s0 + $0xc4] sm:$0xf]
  %v62 = vld [vmem:[%s0 + $0xc8] sm:$0xf]
  %v63 = vld [vmem:[%s0 + $0xcc] sm:$0xf]
  %v64 = vld [vmem:[%s0 + $0xd0] sm:$0xf]
  %v65 = vld [vmem:[%s0 + $0xd4] sm:$0xf]
  %v66 = vld [vmem:[%s0 + $0xd8] sm:$0xf]
  %v67 = vld [vmem:[%s0 + $0xdc] sm:$0xf]
  %v68 = vld [vmem:[%s0 + $0xe0] sm:$0xf]
  %v69 = vld [vmem:[%s0 + $0xe4] sm:$0xf]
  %v70 = vld [vmem:[%s0 + $0xe8] sm:$0xf]
  %v71 = vld [vmem:[%s0 + $0xec] sm:$0xf]
  %v72 = vld [vmem:[%s0 + $0xf0] sm:$0xf]
  %v73 = vld [vmem:[%s0 + $0xf4] sm:$0xf]
  %v74 = vld [vmem:[%s0 + $0xf8] sm:$0xf]
  %v75 = vld [vmem:[%s0 + $0xfc] sm:$0xf]
  %v76 = vld [vmem:[%s1] sm:$0xf]
  %v77 = vld [vmem:[%s1 + $0x4] sm:$0xf]
  %v78 = vld [vmem:[%s1 + $0x8] sm:$0xf]
  %v79 = vld [vmem:[%s1 + $0xc] sm:$0xf]
  %v80 = vld [vmem:[%s1 + $0x10] sm:$0x3]
  %v145 = vunpack.c.l.b16 %v12
  %v146 = vunpack.c.l.b16 %v13
  %v147 = vunpack.c.l.b16 %v14
  %v148 = vunpack.c.l.b16 %v15
  %v149 = vunpack.c.l.b16 %v16
  %v150 = vunpack.c.l.b16 %v17
  %v151 = vunpack.c.l.b16 %v18
  %v152 = vunpack.c.l.b16 %v19
  %v153 = vunpack.c.l.b16 %v20
  %v154 = vunpack.c.l.b16 %v21
  %v155 = vunpack.c.l.b16 %v22
  %v156 = vunpack.c.l.b16 %v23
  %v157 = vunpack.c.l.b16 %v24
  %v158 = vunpack.c.l.b16 %v25
  %v159 = vunpack.c.l.b16 %v26
  %v160 = vunpack.c.l.b16 %v27
  %v161 = vunpack.c.l.b16 %v28
  %v162 = vunpack.c.l.b16 %v29
  %v163 = vunpack.c.l.b16 %v30
  %v164 = vunpack.c.l.b16 %v31
  %v165 = vunpack.c.l.b16 %v32
  %v166 = vunpack.c.l.b16 %v33
  %v167 = vunpack.c.l.b16 %v34
  %v168 = vunpack.c.l.b16 %v35
  %v169 = vunpack.c.l.b16 %v36
  %v170 = vunpack.c.l.b16 %v37
  %v171 = vunpack.c.l.b16 %v38
  %v172 = vunpack.c.l.b16 %v39
  %v173 = vunpack.c.l.b16 %v40
  %v174 = vunpack.c.l.b16 %v41
  %v175 = vunpack.c.l.b16 %v42
  %v176 = vunpack.c.l.b16 %v43
  %v177 = vunpack.c.l.b16 %v44
  %v178 = vunpack.c.l.b16 %v45
  %v179 = vunpack.c.l.b16 %v46
  %v180 = vunpack.c.l.b16 %v47
  %v181 = vunpack.c.l.b16 %v48
  %v182 = vunpack.c.l.b16 %v49
  %v183 = vunpack.c.l.b16 %v50
  %v184 = vunpack.c.l.b16 %v51
  %v185 = vunpack.c.l.b16 %v52
  %v186 = vunpack.c.l.b16 %v53
  %v187 = vunpack.c.l.b16 %v54
  %v188 = vunpack.c.l.b16 %v55
  %v189 = vunpack.c.l.b16 %v56
  %v190 = vunpack.c.l.b16 %v57
  %v191 = vunpack.c.l.b16 %v58
  %v192 = vunpack.c.l.b16 %v59
  %v193 = vunpack.c.l.b16 %v60
  %v194 = vunpack.c.l.b16 %v61
  %v195 = vunpack.c.l.b16 %v62
  %v196 = vunpack.c.l.b16 %v63
  %v197 = vunpack.c.l.b16 %v64
  %v198 = vunpack.c.l.b16 %v65
  %v199 = vunpack.c.l.b16 %v66
  %v200 = vunpack.c.l.b16 %v67
  %v201 = vunpack.c.l.b16 %v68
  %v202 = vunpack.c.l.b16 %v69
  %v203 = vunpack.c.l.b16 %v70
  %v204 = vunpack.c.l.b16 %v71
  %v205 = vunpack.c.l.b16 %v72
  %v206 = vunpack.c.l.b16 %v73
  %v207 = vunpack.c.l.b16 %v74
  %v208 = vunpack.c.l.b16 %v75
  %v209 = vpack.c.b16 %v146, %v145
  %v210 = vpack.c.b16 %v148, %v147
  %v211 = vpack.c.b16 %v150, %v149
  %v212 = vpack.c.b16 %v152, %v151
  %v213 = vpack.c.b16 %v154, %v153
  %v214 = vpack.c.b16 %v156, %v155
  %v215 = vpack.c.b16 %v158, %v157
  %v216 = vpack.c.b16 %v160, %v159
  %v217 = vpack.c.b16 %v162, %v161
  %v218 = vpack.c.b16 %v164, %v163
  %v219 = vpack.c.b16 %v166, %v165
  %v220 = vpack.c.b16 %v168, %v167
  %v221 = vpack.c.b16 %v170, %v169
  %v222 = vpack.c.b16 %v172, %v171
  %v223 = vpack.c.b16 %v174, %v173
  %v224 = vpack.c.b16 %v176, %v175
  %v225 = vpack.c.b16 %v178, %v177
  %v226 = vpack.c.b16 %v180, %v179
  %v227 = vpack.c.b16 %v182, %v181
  %v228 = vpack.c.b16 %v184, %v183
  %v229 = vpack.c.b16 %v186, %v185
  %v230 = vpack.c.b16 %v188, %v187
  %v231 = vpack.c.b16 %v190, %v189
  %v232 = vpack.c.b16 %v192, %v191
  %v233 = vpack.c.b16 %v194, %v193
  %v234 = vpack.c.b16 %v196, %v195
  %v235 = vpack.c.b16 %v198, %v197
  %v236 = vpack.c.b16 %v200, %v199
  %v237 = vpack.c.b16 %v202, %v201
  %v238 = vpack.c.b16 %v204, %v203
  %v239 = vpack.c.b16 %v206, %v205
  %v240 = vpack.c.b16 %v208, %v207
  %v246 = vunpack.c.l.b16 %v76
  %v247 = vunpack.c.l.b16 %v77
  %v248 = vunpack.c.l.b16 %v78
  %v249 = vunpack.c.l.b16 %v79
  %v250 = vunpack.c.l.b16 %v80
  %v251 = vpack.c.b16 %v247, %v246
  %v252 = vpack.c.b16 %v249, %v248
  %v253 = vpack.c.b16 %v250, %v250
  %vm256 = vcmask 293888
  %v258 = vsel %vm256, %v209, 0
  %v261 = vsel %vm256, %v210, 0
  %v264 = vsel %vm256, %v211, 0
  %v267 = vsel %vm256, %v212, 0
  %v270 = vsel %vm256, %v213, 0
  %v273 = vsel %vm256, %v214, 0
  %v276 = vsel %vm256, %v215, 0
  %v279 = vsel %vm256, %v216, 0
  %v282 = vsel %vm256, %v217, 0
  %v285 = vsel %vm256, %v218, 0
  %v288 = vsel %vm256, %v219, 0
  %v291 = vsel %vm256, %v220, 0
  %v294 = vsel %vm256, %v221, 0
  %v297 = vsel %vm256, %v222, 0
  %v300 = vsel %vm256, %v223, 0
  %v303 = vsel %vm256, %v224, 0
  %v306 = vsel %vm256, %v225, 0
  %v309 = vsel %vm256, %v226, 0
  %v312 = vsel %vm256, %v227, 0
  %v315 = vsel %vm256, %v228, 0
  %v318 = vsel %vm256, %v229, 0
  %v321 = vsel %vm256, %v230, 0
  %v324 = vsel %vm256, %v231, 0
  %v327 = vsel %vm256, %v232, 0
  %v330 = vsel %vm256, %v233, 0
  %v333 = vsel %vm256, %v234, 0
  %v336 = vsel %vm256, %v235, 0
  %v339 = vsel %vm256, %v236, 0
  %v342 = vsel %vm256, %v237, 0
  %v345 = vsel %vm256, %v238, 0
  %v348 = vsel %vm256, %v239, 0
  %v351 = vsel %vm256, %v240, 0
  %vm353 = vcmask 1041408
  %v355 = vsel %vm353, %v253, 0
  %357 = vmatprep.subr.bf16.mxu0 0
  %358 = vmatpush1.bf16.msra.mxu0 %v251
  %359 = vmatprep.subr.bf16.mxu0 0
  %360 = vmatpush1.bf16.msra.mxu0 %v252
  %361 = vmatprep.subr.bf16.mxu0 0
  %362 = vmatpush1.bf16.msra.mxu0 %v355
  %363 = vmatprep.subr.bf16.mxu0 0
  %364 = vmatpush1.bf16.msra.mxu0 0
  %365 = vmatprep.subr.bf16.mxu0 0
  %366 = vmatpush1.bf16.msra.mxu0 0
  %367 = vmatprep.subr.bf16.mxu0 0
  %368 = vmatpush1.bf16.msra.mxu0 0
  %369 = vmatprep.subr.bf16.mxu0 0
  %370 = vmatpush1.bf16.msra.mxu0 0
  %371 = vmatprep.subr.bf16.mxu0 0
  %372 = vmatpush1.bf16.msra.mxu0 0
  %373 = vmatprep.subr.bf16.mxu0 0
  %374 = vmatpush1.bf16.msra.mxu0 0
  %375 = vmatprep.subr.bf16.mxu0 0
  %376 = vmatpush1.bf16.msra.mxu0 0
  %377 = vmatprep.subr.bf16.mxu0 0
  %378 = vmatpush1.bf16.msra.mxu0 0
  %379 = vmatprep.subr.bf16.mxu0 0
  %380 = vmatpush1.bf16.msra.mxu0 0
  %381 = vmatprep.subr.bf16.mxu0 0
  %382 = vmatpush1.bf16.msra.mxu0 0
  %383 = vmatprep.subr.bf16.mxu0 0
  %384 = vmatpush1.bf16.msra.mxu0 0
  %385 = vmatprep.subr.bf16.mxu0 0
  %386 = vmatpush1.bf16.msra.mxu0 0
  %387 = vmatprep.subr.bf16.mxu0 0
  %388 = vmatpush1.bf16.msra.mxu0 0
  %389 = vmatprep.mubr.bf16.mxu0 0
  %390 = vmatmul.mubr.bf16.gmra.mrb[0].mxu0 %v258
  %v391 = vpop.f32.mrb[0].mxu0
  %v392 = vadd.f32 0.0, %v391
  %v393 = vpop.f32.mrb[0].mxu0
  %v394 = vpop.f32.mrb[0].mxu0
  %v395 = vadd.f32 0.0, %v394
  %v396 = vpop.f32.mrb[0].mxu0
  %397 = vmatprep.mubr.bf16.mxu0 0
  %398 = vmatmul.mubr.bf16.gmra.mrb[0].mxu0 %v261
  %v399 = vpop.f32.mrb[0].mxu0
  %v400 = vadd.f32 0.0, %v399
  %v401 = vpop.f32.mrb[0].mxu0
  %v402 = vpop.f32.mrb[0].mxu0
  %v403 = vadd.f32 0.0, %v402
  %v404 = vpop.f32.mrb[0].mxu0
  %405 = vmatprep.mubr.bf16.mxu0 0
  %406 = vmatmul.mubr.bf16.gmra.mrb[0].mxu0 %v264
  %v407 = vpop.f32.mrb[0].mxu0
  %v408 = vadd.f32 0.0, %v407
  %v409 = vpop.f32.mrb[0].mxu0
  %v410 = vpop.f32.mrb[0].mxu0
  %v411 = vadd.f32 0.0, %v410
  %v412 = vpop.f32.mrb[0].mxu0
  %413 = vmatprep.mubr.bf16.mxu0 0
  %414 = vmatmul.mubr.bf16.gmra.mrb[0].mxu0 %v267
  %v415 = vpop.f32.mrb[0].mxu0
  %v416 = vadd.f32 0.0, %v415
  %v417 = vpop.f32.mrb[0].mxu0
  %v418 = vpop.f32.mrb[0].mxu0
  %v419 = vadd.f32 0.0, %v418
  %v420 = vpop.f32.mrb[0].mxu0
  %421 = vmatprep.mubr.bf16.mxu0 0
  %422 = vmatmul.mubr.bf16.gmra.mrb[0].mxu0 %v270
  %v423 = vpop.f32.mrb[0].mxu0
  %v424 = vadd.f32 0.0, %v423
  %v425 = vpop.f32.mrb[0].mxu0
  %v426 = vpop.f32.mrb[0].mxu0
  %v427 = vadd.f32 0.0, %v426
  %v428 = vpop.f32.mrb[0].mxu0
  %429 = vmatprep.mubr.bf16.mxu0 0
  %430 = vmatmul.mubr.bf16.gmra.mrb[0].mxu0 %v273
  %v431 = vpop.f32.mrb[0].mxu0
  %v432 = vadd.f32 0.0, %v431
  %v433 = vpop.f32.mrb[0].mxu0
  %v434 = vpop.f32.mrb[0].mxu0
  %v435 = vadd.f32 0.0, %v434
  %v436 = vpop.f32.mrb[0].mxu0
  %437 = vmatprep.mubr.bf16.mxu0 0
  %438 = vmatmul.mubr.bf16.gmra.mrb[0].mxu0 %v276
  %v439 = vpop.f32.mrb[0].mxu0
  %v440 = vadd.f32 0.0, %v439
  %v441 = vpop.f32.mrb[0].mxu0
  %v442 = vpop.f32.mrb[0].mxu0
  %v443 = vadd.f32 0.0, %v442
  %v444 = vpop.f32.mrb[0].mxu0
  %445 = vmatprep.mubr.bf16.mxu0 0
  %446 = vmatmul.mubr.bf16.gmra.mrb[0].mxu0 %v279
  %v447 = vpop.f32.mrb[0].mxu0
  %v448 = vadd.f32 0.0, %v447
  %v449 = vpop.f32.mrb[0].mxu0
  %v450 = vpop.f32.mrb[0].mxu0
  %v451 = vadd.f32 0.0, %v450
  %v452 = vpop.f32.mrb[0].mxu0
  %453 = vmatprep.mubr.bf16.mxu0 0
  %454 = vmatmul.mubr.bf16.gmra.mrb[0].mxu0 %v282
  %v455 = vpop.f32.mrb[0].mxu0
  %v456 = vadd.f32 0.0, %v455
  %v457 = vpop.f32.mrb[0].mxu0
  %v458 = vpop.f32.mrb[0].mxu0
  %v459 = vadd.f32 0.0, %v458
  %v460 = vpop.f32.mrb[0].mxu0
  %461 = vmatprep.mubr.bf16.mxu0 0
  %462 = vmatmul.mubr.bf16.gmra.mrb[0].mxu0 %v285
  %v463 = vpop.f32.mrb[0].mxu0
  %v464 = vadd.f32 0.0, %v463
  %v465 = vpop.f32.mrb[0].mxu0
  %v466 = vpop.f32.mrb[0].mxu0
  %v467 = vadd.f32 0.0, %v466
  %v468 = vpop.f32.mrb[0].mxu0
  %469 = vmatprep.mubr.bf16.mxu0 0
  %470 = vmatmul.mubr.bf16.gmra.mrb[0].mxu0 %v288
  %v471 = vpop.f32.mrb[0].mxu0
  %v472 = vadd.f32 0.0, %v471
  %v473 = vpop.f32.mrb[0].mxu0
  %v474 = vpop.f32.mrb[0].mxu0
  %v475 = vadd.f32 0.0, %v474
  %v476 = vpop.f32.mrb[0].mxu0
  %477 = vmatprep.mubr.bf16.mxu0 0
  %478 = vmatmul.mubr.bf16.gmra.mrb[0].mxu0 %v291
  %v479 = vpop.f32.mrb[0].mxu0
  %v480 = vadd.f32 0.0, %v479
  %v481 = vpop.f32.mrb[0].mxu0
  %v482 = vpop.f32.mrb[0].mxu0
  %v483 = vadd.f32 0.0, %v482
  %v484 = vpop.f32.mrb[0].mxu0
  %485 = vmatprep.mubr.bf16.mxu0 0
  %486 = vmatmul.mubr.bf16.gmra.mrb[0].mxu0 %v294
  %v487 = vpop.f32.mrb[0].mxu0
  %v488 = vadd.f32 0.0, %v487
  %v489 = vpop.f32.mrb[0].mxu0
  %v490 = vpop.f32.mrb[0].mxu0
  %v491 = vadd.f32 0.0, %v490
  %v492 = vpop.f32.mrb[0].mxu0
  %493 = vmatprep.mubr.bf16.mxu0 0
  %494 = vmatmul.mubr.bf16.gmra.mrb[0].mxu0 %v297
  %v495 = vpop.f32.mrb[0].mxu0
  %v496 = vadd.f32 0.0, %v495
  %v497 = vpop.f32.mrb[0].mxu0
  %v498 = vpop.f32.mrb[0].mxu0
  %v499 = vadd.f32 0.0, %v498
  %v500 = vpop.f32.mrb[0].mxu0
  %501 = vmatprep.mubr.bf16.mxu0 0
  %502 = vmatmul.mubr.bf16.gmra.mrb[0].mxu0 %v300
  %v503 = vpop.f32.mrb[0].mxu0
  %v504 = vadd.f32 0.0, %v503
  %v505 = vpop.f32.mrb[0].mxu0
  %v506 = vpop.f32.mrb[0].mxu0
  %v507 = vadd.f32 0.0, %v506
  %v508 = vpop.f32.mrb[0].mxu0
  %509 = vmatprep.mubr.bf16.mxu0 0
  %510 = vmatmul.mubr.bf16.gmra.mrb[0].mxu0 %v303
  %v511 = vpop.f32.mrb[0].mxu0
  %v512 = vadd.f32 0.0, %v511
  %v513 = vpop.f32.mrb[0].mxu0
  %v514 = vpop.f32.mrb[0].mxu0
  %v515 = vadd.f32 0.0, %v514
  %v516 = vpop.f32.mrb[0].mxu0
  %517 = vmatprep.mubr.bf16.mxu0 0
  %518 = vmatmul.mubr.bf16.gmra.mrb[0].mxu0 %v306
  %v519 = vpop.f32.mrb[0].mxu0
  %v520 = vadd.f32 0.0, %v519
  %v521 = vpop.f32.mrb[0].mxu0
  %v522 = vpop.f32.mrb[0].mxu0
  %v523 = vadd.f32 0.0, %v522
  %v524 = vpop.f32.mrb[0].mxu0
  %525 = vmatprep.mubr.bf16.mxu0 0
  %526 = vmatmul.mubr.bf16.gmra.mrb[0].mxu0 %v309
  %v527 = vpop.f32.mrb[0].mxu0
  %v528 = vadd.f32 0.0, %v527
  %v529 = vpop.f32.mrb[0].mxu0
  %v530 = vpop.f32.mrb[0].mxu0
  %v531 = vadd.f32 0.0, %v530
  %v532 = vpop.f32.mrb[0].mxu0
  %533 = vmatprep.mubr.bf16.mxu0 0
  %534 = vmatmul.mubr.bf16.gmra.mrb[0].mxu0 %v312
  %v535 = vpop.f32.mrb[0].mxu0
  %v536 = vadd.f32 0.0, %v535
  %v537 = vpop.f32.mrb[0].mxu0
  %v538 = vpop.f32.mrb[0].mxu0
  %v539 = vadd.f32 0.0, %v538
  %v540 = vpop.f32.mrb[0].mxu0
  %541 = vmatprep.mubr.bf16.mxu0 0
  %542 = vmatmul.mubr.bf16.gmra.mrb[0].mxu0 %v315
  %v543 = vpop.f32.mrb[0].mxu0
  %v544 = vadd.f32 0.0, %v543
  %v545 = vpop.f32.mrb[0].mxu0
  %v546 = vpop.f32.mrb[0].mxu0
  %v547 = vadd.f32 0.0, %v546
  %v548 = vpop.f32.mrb[0].mxu0
  %549 = vmatprep.mubr.bf16.mxu0 0
  %550 = vmatmul.mubr.bf16.gmra.mrb[0].mxu0 %v318
  %v551 = vpop.f32.mrb[0].mxu0
  %v552 = vadd.f32 0.0, %v551
  %v553 = vpop.f32.mrb[0].mxu0
  %v554 = vpop.f32.mrb[0].mxu0
  %v555 = vadd.f32 0.0, %v554
  %v556 = vpop.f32.mrb[0].mxu0
  %557 = vmatprep.mubr.bf16.mxu0 0
  %558 = vmatmul.mubr.bf16.gmra.mrb[0].mxu0 %v321
  %v559 = vpop.f32.mrb[0].mxu0
  %v560 = vadd.f32 0.0, %v559
  %v561 = vpop.f32.mrb[0].mxu0
  %v562 = vpop.f32.mrb[0].mxu0
  %v563 = vadd.f32 0.0, %v562
  %v564 = vpop.f32.mrb[0].mxu0
  %565 = vmatprep.mubr.bf16.mxu0 0
  %566 = vmatmul.mubr.bf16.gmra.mrb[0].mxu0 %v324
  %v567 = vpop.f32.mrb[0].mxu0
  %v568 = vadd.f32 0.0, %v567
  %v569 = vpop.f32.mrb[0].mxu0
  %v570 = vpop.f32.mrb[0].mxu0
  %v571 = vadd.f32 0.0, %v570
  %v572 = vpop.f32.mrb[0].mxu0
  %573 = vmatprep.mubr.bf16.mxu0 0
  %574 = vmatmul.mubr.bf16.gmra.mrb[0].mxu0 %v327
  %v575 = vpop.f32.mrb[0].mxu0
  %v576 = vadd.f32 0.0, %v575
  %v577 = vpop.f32.mrb[0].mxu0
  %v578 = vpop.f32.mrb[0].mxu0
  %v579 = vadd.f32 0.0, %v578
  %v580 = vpop.f32.mrb[0].mxu0
  %581 = vmatprep.mubr.bf16.mxu0 0
  %582 = vmatmul.mubr.bf16.gmra.mrb[0].mxu0 %v330
  %v583 = vpop.f32.mrb[0].mxu0
  %v584 = vadd.f32 0.0, %v583
  %v585 = vpop.f32.mrb[0].mxu0
  %v586 = vpop.f32.mrb[0].mxu0
  %v587 = vadd.f32 0.0, %v586
  %v588 = vpop.f32.mrb[0].mxu0
  %589 = vmatprep.mubr.bf16.mxu0 0
  %590 = vmatmul.mubr.bf16.gmra.mrb[0].mxu0 %v333
  %v591 = vpop.f32.mrb[0].mxu0
  %v592 = vadd.f32 0.0, %v591
  %v593 = vpop.f32.mrb[0].mxu0
  %v594 = vpop.f32.mrb[0].mxu0
  %v595 = vadd.f32 0.0, %v594
  %v596 = vpop.f32.mrb[0].mxu0
  %597 = vmatprep.mubr.bf16.mxu0 0
  %598 = vmatmul.mubr.bf16.gmra.mrb[0].mxu0 %v336
  %v599 = vpop.f32.mrb[0].mxu0
  %v600 = vadd.f32 0.0, %v599
  %v601 = vpop.f32.mrb[0].mxu0
  %v602 = vpop.f32.mrb[0].mxu0
  %v603 = vadd.f32 0.0, %v602
  %v604 = vpop.f32.mrb[0].mxu0
  %605 = vmatprep.mubr.bf16.mxu0 0
  %606 = vmatmul.mubr.bf16.gmra.mrb[0].mxu0 %v339
  %v607 = vpop.f32.mrb[0].mxu0
  %v608 = vadd.f32 0.0, %v607
  %v609 = vpop.f32.mrb[0].mxu0
  %v610 = vpop.f32.mrb[0].mxu0
  %v611 = vadd.f32 0.0, %v610
  %v612 = vpop.f32.mrb[0].mxu0
  %613 = vmatprep.mubr.bf16.mxu0 0
  %614 = vmatmul.mubr.bf16.gmra.mrb[0].mxu0 %v342
  %v615 = vpop.f32.mrb[0].mxu0
  %v616 = vadd.f32 0.0, %v615
  %v617 = vpop.f32.mrb[0].mxu0
  %v618 = vpop.f32.mrb[0].mxu0
  %v619 = vadd.f32 0.0, %v618
  %v620 = vpop.f32.mrb[0].mxu0
  %621 = vmatprep.mubr.bf16.mxu0 0
  %622 = vmatmul.mubr.bf16.gmra.mrb[0].mxu0 %v345
  %v623 = vpop.f32.mrb[0].mxu0
  %v624 = vadd.f32 0.0, %v623
  %v625 = vpop.f32.mrb[0].mxu0
  %v626 = vpop.f32.mrb[0].mxu0
  %v627 = vadd.f32 0.0, %v626
  %v628 = vpop.f32.mrb[0].mxu0
  %629 = vmatprep.mubr.bf16.mxu0 0
  %630 = vmatmul.mubr.bf16.gmra.mrb[0].mxu0 %v348
  %v631 = vpop.f32.mrb[0].mxu0
  %v632 = vadd.f32 0.0, %v631
  %v633 = vpop.f32.mrb[0].mxu0
  %v634 = vpop.f32.mrb[0].mxu0
  %v635 = vadd.f32 0.0, %v634
  %v636 = vpop.f32.mrb[0].mxu0
  %637 = vmatprep.mubr.bf16.mxu0 0
  %638 = vmatmul.mubr.bf16.gmra.mrb[0].mxu0 %v351
  %v639 = vpop.f32.mrb[0].mxu0
  %v640 = vadd.f32 0.0, %v639
  %v641 = vpop.f32.mrb[0].mxu0
  %v642 = vpop.f32.mrb[0].mxu0
  %v643 = vadd.f32 0.0, %v642
  %v644 = vpop.f32.mrb[0].mxu0
  %645 = vdwg.mxu0
  %v646 = vmax.f32 %v392, 0.0
  %v647 = vmax.f32 %v395, 0.0
  %v648 = vmax.f32 %v400, 0.0
  %v649 = vmax.f32 %v403, 0.0
  %v650 = vmax.f32 %v408, 0.0
  %v651 = vmax.f32 %v411, 0.0
  %v652 = vmax.f32 %v416, 0.0
  %v653 = vmax.f32 %v419, 0.0
  %v654 = vmax.f32 %v424, 0.0
  %v655 = vmax.f32 %v427, 0.0
  %v656 = vmax.f32 %v432, 0.0
  %v657 = vmax.f32 %v435, 0.0
  %v658 = vmax.f32 %v440, 0.0
  %v659 = vmax.f32 %v443, 0.0
  %v660 = vmax.f32 %v448, 0.0
  %v661 = vmax.f32 %v451, 0.0
  %v662 = vmax.f32 %v456, 0.0
  %v663 = vmax.f32 %v459, 0.0
  %v664 = vmax.f32 %v464, 0.0
  %v665 = vmax.f32 %v467, 0.0
  %v666 = vmax.f32 %v472, 0.0
  %v667 = vmax.f32 %v475, 0.0
  %v668 = vmax.f32 %v480, 0.0
  %v669 = vmax.f32 %v483, 0.0
  %v670 = vmax.f32 %v488, 0.0
  %v671 = vmax.f32 %v491, 0.0
  %v672 = vmax.f32 %v496, 0.0
  %v673 = vmax.f32 %v499, 0.0
  %v674 = vmax.f32 %v504, 0.0
  %v675 = vmax.f32 %v507, 0.0
  %v676 = vmax.f32 %v512, 0.0
  %v677 = vmax.f32 %v515, 0.0
  %v678 = vmax.f32 %v520, 0.0
  %v679 = vmax.f32 %v523, 0.0
  %v680 = vmax.f32 %v528, 0.0
  %v681 = vmax.f32 %v531, 0.0
  %v682 = vmax.f32 %v536, 0.0
  %v683 = vmax.f32 %v539, 0.0
  %v684 = vmax.f32 %v544, 0.0
  %v685 = vmax.f32 %v547, 0.0
  %v686 = vmax.f32 %v552, 0.0
  %v687 = vmax.f32 %v555, 0.0
  %v688 = vmax.f32 %v560, 0.0
  %v689 = vmax.f32 %v563, 0.0
  %v690 = vmax.f32 %v568, 0.0
  %v691 = vmax.f32 %v571, 0.0
  %v692 = vmax.f32 %v576, 0.0
  %v693 = vmax.f32 %v579, 0.0
  %v694 = vmax.f32 %v584, 0.0
  %v695 = vmax.f32 %v587, 0.0
  %v696 = vmax.f32 %v592, 0.0
  %v697 = vmax.f32 %v595, 0.0
  %v698 = vmax.f32 %v600, 0.0
  %v699 = vmax.f32 %v603, 0.0
  %v700 = vmax.f32 %v608, 0.0
  %v701 = vmax.f32 %v611, 0.0
  %v702 = vmax.f32 %v616, 0.0
  %v703 = vmax.f32 %v619, 0.0
  %v704 = vmax.f32 %v624, 0.0
  %v705 = vmax.f32 %v627, 0.0
  %v706 = vmax.f32 %v632, 0.0
  %v707 = vmax.f32 %v635, 0.0
  %v708 = vmax.f32 %v640, 0.0
  %v709 = vmax.f32 %v643, 0.0
  %710 = vst [vmem:[%s2] sm:$0xff] %v646
  %711 = vst [vmem:[%s2 + $0x8] sm:$0xff] %v647
  %712 = vst [vmem:[%s2 + $0x10] sm:$0xff] %v648
  %713 = vst [vmem:[%s2 + $0x18] sm:$0xff] %v649
  %714 = vst [vmem:[%s2 + $0x20] sm:$0xff] %v650
  %715 = vst [vmem:[%s2 + $0x28] sm:$0xff] %v651
  %716 = vst [vmem:[%s2 + $0x30] sm:$0xff] %v652
  %717 = vst [vmem:[%s2 + $0x38] sm:$0xff] %v653
  %718 = vst [vmem:[%s2 + $0x40] sm:$0xff] %v654
  %719 = vst [vmem:[%s2 + $0x48] sm:$0xff] %v655
  %720 = vst [vmem:[%s2 + $0x50] sm:$0xff] %v656
  %721 = vst [vmem:[%s2 + $0x58] sm:$0xff] %v657
  %722 = vst [vmem:[%s2 + $0x60] sm:$0xff] %v658
  %723 = vst [vmem:[%s2 + $0x68] sm:$0xff] %v659
  %724 = vst [vmem:[%s2 + $0x70] sm:$0xff] %v660
  %725 = vst [vmem:[%s2 + $0x78] sm:$0xff] %v661
  %726 = vst [vmem:[%s2 + $0x80] sm:$0xff] %v662
  %727 = vst [vmem:[%s2 + $0x88] sm:$0xff] %v663
  %728 = vst [vmem:[%s2 + $0x90] sm:$0xff] %v664
  %729 = vst [vmem:[%s2 + $0x98] sm:$0xff] %v665
  %730 = vst [vmem:[%s2 + $0xa0] sm:$0xff] %v666
  %731 = vst [vmem:[%s2 + $0xa8] sm:$0xff] %v667
  %732 = vst [vmem:[%s2 + $0xb0] sm:$0xff] %v668
  %733 = vst [vmem:[%s2 + $0xb8] sm:$0xff] %v669
  %734 = vst [vmem:[%s2 + $0xc0] sm:$0xff] %v670
  %735 = vst [vmem:[%s2 + $0xc8] sm:$0xff] %v671
  %736 = vst [vmem:[%s2 + $0xd0] sm:$0xff] %v672
  %737 = vst [vmem:[%s2 + $0xd8] sm:$0xff] %v673
  %738 = vst [vmem:[%s2 + $0xe0] sm:$0xff] %v674
  %739 = vst [vmem:[%s2 + $0xe8] sm:$0xff] %v675
  %740 = vst [vmem:[%s2 + $0xf0] sm:$0xff] %v676
  %741 = vst [vmem:[%s2 + $0xf8] sm:$0xff] %v677
  %742 = vst [vmem:[%s2 + $0x100] sm:$0xff] %v678
  %743 = vst [vmem:[%s2 + $0x108] sm:$0xff] %v679
  %744 = vst [vmem:[%s2 + $0x110] sm:$0xff] %v680
  %745 = vst [vmem:[%s2 + $0x118] sm:$0xff] %v681
  %746 = vst [vmem:[%s2 + $0x120] sm:$0xff] %v682
  %747 = vst [vmem:[%s2 + $0x128] sm:$0xff] %v683
  %748 = vst [vmem:[%s2 + $0x130] sm:$0xff] %v684
  %749 = vst [vmem:[%s2 + $0x138] sm:$0xff] %v685
  %750 = vst [vmem:[%s2 + $0x140] sm:$0xff] %v686
  %751 = vst [vmem:[%s2 + $0x148] sm:$0xff] %v687
  %752 = vst [vmem:[%s2 + $0x150] sm:$0xff] %v688
  %753 = vst [vmem:[%s2 + $0x158] sm:$0xff] %v689
  %754 = vst [vmem:[%s2 + $0x160] sm:$0xff] %v690
  %755 = vst [vmem:[%s2 + $0x168] sm:$0xff] %v691
  %756 = vst [vmem:[%s2 + $0x170] sm:$0xff] %v692
  %757 = vst [vmem:[%s2 + $0x178] sm:$0xff] %v693
  %758 = vst [vmem:[%s2 + $0x180] sm:$0xff] %v694
  %759 = vst [vmem:[%s2 + $0x188] sm:$0xff] %v695
  %760 = vst [vmem:[%s2 + $0x190] sm:$0xff] %v696
  %761 = vst [vmem:[%s2 + $0x198] sm:$0xff] %v697
  %762 = vst [vmem:[%s2 + $0x1a0] sm:$0xff] %v698
  %763 = vst [vmem:[%s2 + $0x1a8] sm:$0xff] %v699
  %764 = vst [vmem:[%s2 + $0x1b0] sm:$0xff] %v700
  %765 = vst [vmem:[%s2 + $0x1b8] sm:$0xff] %v701
  %766 = vst [vmem:[%s2 + $0x1c0] sm:$0xff] %v702
  %767 = vst [vmem:[%s2 + $0x1c8] sm:$0xff] %v703
  %768 = vst [vmem:[%s2 + $0x1d0] sm:$0xff] %v704
  %769 = vst [vmem:[%s2 + $0x1d8] sm:$0xff] %v705
  %770 = vst [vmem:[%s2 + $0x1e0] sm:$0xff] %v706
  %771 = vst [vmem:[%s2 + $0x1e8] sm:$0xff] %v707
  %772 = vst [vmem:[%s2 + $0x1f0] sm:$0xff] %v708
  %773 = vst [vmem:[%s2 + $0x1f8] sm:$0xff] %v709
  // Predicated region
  $region10: #{basic_conv_forward.1} parent=0 // pred_check
    _
  $region11: #{basic_conv_forward.1} parent=0 // pred_check_branch
    %775 = sbr.rel (0) target = $region13
  $region12: #{basic_conv_forward.1} parent=0 // pred_region
    _
  $region13: #{basic_conv_forward.1} parent=0 // pred_fallthru
    _
  // Predicated region
  $region14: #{basic_conv_forward.1} parent=0 // pred_check
    _
  $region15: #{basic_conv_forward.1} parent=0 // pred_check_branch
    %777 = sbr.rel (0) target = $region17
  $region16: #{basic_conv_forward.1} parent=0 // pred_region
    _
  $region17: #{basic_conv_forward.1} parent=0 // pred_fallthru
    _

</llo_original>
